<compile_context>
chip_gen: v5e
topology: v5e:2x2
jax: 0.10.0
libtpu: 0.0.40
codegen_flags: <defaults>
</compile_context>

<pallas_src>
import jax
import jax.numpy as jnp
from jax.experimental import pallas as pl
from jax.experimental.pallas import tpu as pltpu


def _residual_pwconv_kernel(x_ref, w_ref, b_ref, o_ref):
    # x_ref: (BB, C, TN) tile -- channels on sublanes, spatial on lanes
    # w_ref: (C_out, C_in)  pointwise-conv weight (single vreg for C=8)
    # b_ref: (C, 1)         bias, broadcast along lanes
    C = w_ref.shape[0]
    xf = x_ref[...].astype(jnp.float32)                       # (BB, C, TN)
    w = w_ref[...].astype(jnp.float32)                        # (C, C)
    # Initialize the accumulator with bias + residual: saves one add pass.
    acc = xf + b_ref[...].astype(jnp.float32)                 # (C,1) broadcasts
    # Unrolled VPU channel mix (C is small / static): for each input channel k,
    # broadcast x[:, k, :] across the output-channel sublanes and scale by the
    # weight column w[:, k].  All work lands on the VALU; the MXU stays idle.
    for k in range(C):
        acc = acc + w[:, k:k + 1] * xf[:, k:k + 1, :]         # (C,1)*(BB,1,TN)
    o_ref[...] = acc.astype(o_ref.dtype)


def residual_pointwise_conv(x_nchw, w_conv, b_conv, *, tn=65536,
                            target_step_bytes=2 << 20):
    """y = Conv2d_1x1(x) + x, matching the PyTorch Residual forward.

    x_nchw : (B, C, H, W)
    w_conv : (C_out, C_in, 1, 1)  PyTorch conv weight layout (C_out == C_in == C)
    b_conv : (C_out,)
    tn     : target lane-tile width (multiple of 128).  Default 65536 gives
             ~2 MiB f32 input blocks: fits v5e's 16 MiB default scoped VMEM
             double-buffered, and amortizes per-step overhead on v6e/v7x.
    """
    B, C, H, W = x_nchw.shape
    assert w_conv.shape == (C, C, 1, 1)

    N = H * W
    x3 = x_nchw.reshape(B, C, N)          # metadata-only reshape: spatial -> lanes
    itemsize = x3.dtype.itemsize

    # --- spatial tiling (no jnp.pad / slice round trips) ---
    tn = max(128, (tn // 128) * 128)
    if N % 128 == 0:
        tn_eff = min(tn, N)               # ragged last block is masked by Pallas
    else:
        tn_eff = N                        # full-extent last dim: legal block,
                                          # tail handled by masked stores
    grid_n = pl.cdiv(N, tn_eff)

    # Ensure >=2 total grid steps where possible (v7x has 2 TensorCores).
    if B == 1 and grid_n == 1 and N % 128 == 0 and N >= 256:
        tn_eff = pl.cdiv(N, 2 * 128) * 128
        grid_n = pl.cdiv(N, tn_eff)

    # --- batch blocking for small spatial extents ---
    # Pack several images per grid step so each step moves ~target_step_bytes,
    # while keeping >= 2 total steps when B >= 2.
    bb = 1
    if grid_n == 1 and B > 1:
        per_image = C * tn_eff * itemsize
        bb_cap = max(1, min(B // 2, target_step_bytes // max(per_image, 1)))
        bb = max(d for d in range(1, int(bb_cap) + 1) if B % d == 0)
    grid_b = B // bb

    w_mat = w_conv[:, :, 0, 0]            # (C_out, C_in): used directly, no transposes
    b_mat = b_conv.reshape(C, 1)          # broadcast over lanes inside the kernel

    # Raise scoped VMEM only if the double-buffered blocks need it.
    block_bytes = bb * C * tn_eff * itemsize
    vmem_need = 4 * block_bytes + (2 << 20)        # 2x(in)+2x(out) + slack
    cp_kwargs = dict(dimension_semantics=("parallel", "parallel"))
    if vmem_need > (16 << 20):
        cp_kwargs["vmem_limit_bytes"] = int(min(vmem_need, 48 << 20))

    out = pl.pallas_call(
        _residual_pwconv_kernel,
        out_shape=jax.ShapeDtypeStruct((B, C, N), x3.dtype),
        grid_spec=pltpu.PrefetchScalarGridSpec(
            num_scalar_prefetch=0,
            grid=(grid_b, grid_n),
            in_specs=[
                pl.BlockSpec((bb, C, tn_eff), lambda b, j: (b, 0, j)),
                pl.BlockSpec((C, C), lambda b, j: (0, 0)),
                pl.BlockSpec((C, 1), lambda b, j: (0, 0)),
            ],
            out_specs=pl.BlockSpec((bb, C, tn_eff), lambda b, j: (b, 0, j)),
        ),
        compiler_params=pltpu.CompilerParams(**cp_kwargs),
    )(x3, w_mat, b_mat)

    return out.reshape(B, C, H, W)


if __name__ == "__main__":
    key = jax.random.PRNGKey(0)
    kx, kw, kb = jax.random.split(key, 3)

    B, C, H, W = 2, 8, 16, 16
    x = jax.random.normal(kx, (B, C, H, W), dtype=jnp.float32)
    # Deterministic synthetic parameters for the wrapped 1x1 conv.
    w_conv = jax.random.normal(kw, (C, C, 1, 1), dtype=jnp.float32) * 0.1
    b_conv = jax.random.normal(kb, (C,), dtype=jnp.float32) * 0.1

    y = residual_pointwise_conv(x, w_conv, b_conv)
    y = jax.block_until_ready(y)

    # Pure-JAX reference of the same forward: conv1x1(x) + bias + x.
    w_mat = w_conv[:, :, 0, 0]            # (C_out, C_in)
    ref = (
        jnp.einsum("dc,bchw->bdhw", w_mat, x)
        + b_conv.reshape(1, C, 1, 1)
        + x
    )
    assert y.shape == x.shape and y.dtype == x.dtype
    assert jnp.allclose(y, ref, atol=1e-5, rtol=1e-5)

    print("KERNEL_OK")
</pallas_src>

<mosaic_0001>
module attributes {stable_mosaic.version = 11 : i64} {
  func.func @_residual_pwconv_kernel(%arg0: i32, %arg1: i32, %arg2: memref<1x8x256xf32, #tpu.memory_space<vmem>>, %arg3: memref<8x8xf32, #tpu.memory_space<vmem>>, %arg4: memref<8x1xf32, #tpu.memory_space<vmem>>, %arg5: memref<1x8x256xf32, #tpu.memory_space<vmem>>) attributes {dimension_semantics = [#tpu.dimension_semantics<parallel>, #tpu.dimension_semantics<parallel>], iteration_bounds = array<i64: 2, 1>, scalar_prefetch = 0 : i64, scratch_operands = 0 : i64, tpu.core_type = #tpu.core_type<tc>, window_params = [{transform_indices = @transform_0, window_bounds = array<i64: 1, 8, 256>}, {pipeline_mode = #tpu.pipeline_mode<synchronous>, transform_indices = @transform_1, window_bounds = array<i64: 8, 8>}, {pipeline_mode = #tpu.pipeline_mode<synchronous>, transform_indices = @transform_2, window_bounds = array<i64: 8, 1>}, {transform_indices = @transform_3, window_bounds = array<i64: 1, 8, 256>}]} {
    %c0 = arith.constant 0 : index
    %c0_0 = arith.constant 0 : index
    %c0_1 = arith.constant 0 : index
    %0 = vector.load %arg2[%c0, %c0_0, %c0_1] : memref<1x8x256xf32, #tpu.memory_space<vmem>>, vector<1x8x256xf32>
    %c0_2 = arith.constant 0 : index
    %c0_3 = arith.constant 0 : index
    %1 = vector.load %arg3[%c0_2, %c0_3] : memref<8x8xf32, #tpu.memory_space<vmem>>, vector<8x8xf32>
    %c0_4 = arith.constant 0 : index
    %c0_5 = arith.constant 0 : index
    %2 = vector.load %arg4[%c0_4, %c0_5] : memref<8x1xf32, #tpu.memory_space<vmem>>, vector<8x1xf32>
    %3 = vector.shape_cast %2 : vector<8x1xf32> to vector<1x8x1xf32>
    %4 = vector.broadcast %3 : vector<1x8x1xf32> to vector<1x8x256xf32>
    %5 = arith.addf %0, %4 : vector<1x8x256xf32>
    %6 = vector.extract_strided_slice %1 {offsets = [0, 0], sizes = [8, 1], strides = [1, 1]} : vector<8x8xf32> to vector<8x1xf32>
    %7 = vector.extract_strided_slice %0 {offsets = [0, 0, 0], sizes = [1, 1, 256], strides = [1, 1, 1]} : vector<1x8x256xf32> to vector<1x1x256xf32>
    %8 = vector.shape_cast %6 : vector<8x1xf32> to vector<1x8x1xf32>
    %9 = vector.broadcast %8 : vector<1x8x1xf32> to vector<1x8x256xf32>
    %10 = vector.broadcast %7 : vector<1x1x256xf32> to vector<1x8x256xf32>
    %11 = arith.mulf %9, %10 : vector<1x8x256xf32>
    %12 = arith.addf %5, %11 : vector<1x8x256xf32>
    %13 = vector.extract_strided_slice %1 {offsets = [0, 1], sizes = [8, 1], strides = [1, 1]} : vector<8x8xf32> to vector<8x1xf32>
    %14 = vector.extract_strided_slice %0 {offsets = [0, 1, 0], sizes = [1, 1, 256], strides = [1, 1, 1]} : vector<1x8x256xf32> to vector<1x1x256xf32>
    %15 = vector.shape_cast %13 : vector<8x1xf32> to vector<1x8x1xf32>
    %16 = vector.broadcast %15 : vector<1x8x1xf32> to vector<1x8x256xf32>
    %17 = vector.broadcast %14 : vector<1x1x256xf32> to vector<1x8x256xf32>
    %18 = arith.mulf %16, %17 : vector<1x8x256xf32>
    %19 = arith.addf %12, %18 : vector<1x8x256xf32>
    %20 = vector.extract_strided_slice %1 {offsets = [0, 2], sizes = [8, 1], strides = [1, 1]} : vector<8x8xf32> to vector<8x1xf32>
    %21 = vector.extract_strided_slice %0 {offsets = [0, 2, 0], sizes = [1, 1, 256], strides = [1, 1, 1]} : vector<1x8x256xf32> to vector<1x1x256xf32>
    %22 = vector.shape_cast %20 : vector<8x1xf32> to vector<1x8x1xf32>
    %23 = vector.broadcast %22 : vector<1x8x1xf32> to vector<1x8x256xf32>
    %24 = vector.broadcast %21 : vector<1x1x256xf32> to vector<1x8x256xf32>
    %25 = arith.mulf %23, %24 : vector<1x8x256xf32>
    %26 = arith.addf %19, %25 : vector<1x8x256xf32>
    %27 = vector.extract_strided_slice %1 {offsets = [0, 3], sizes = [8, 1], strides = [1, 1]} : vector<8x8xf32> to vector<8x1xf32>
    %28 = vector.extract_strided_slice %0 {offsets = [0, 3, 0], sizes = [1, 1, 256], strides = [1, 1, 1]} : vector<1x8x256xf32> to vector<1x1x256xf32>
    %29 = vector.shape_cast %27 : vector<8x1xf32> to vector<1x8x1xf32>
    %30 = vector.broadcast %29 : vector<1x8x1xf32> to vector<1x8x256xf32>
    %31 = vector.broadcast %28 : vector<1x1x256xf32> to vector<1x8x256xf32>
    %32 = arith.mulf %30, %31 : vector<1x8x256xf32>
    %33 = arith.addf %26, %32 : vector<1x8x256xf32>
    %34 = vector.extract_strided_slice %1 {offsets = [0, 4], sizes = [8, 1], strides = [1, 1]} : vector<8x8xf32> to vector<8x1xf32>
    %35 = vector.extract_strided_slice %0 {offsets = [0, 4, 0], sizes = [1, 1, 256], strides = [1, 1, 1]} : vector<1x8x256xf32> to vector<1x1x256xf32>
    %36 = vector.shape_cast %34 : vector<8x1xf32> to vector<1x8x1xf32>
    %37 = vector.broadcast %36 : vector<1x8x1xf32> to vector<1x8x256xf32>
    %38 = vector.broadcast %35 : vector<1x1x256xf32> to vector<1x8x256xf32>
    %39 = arith.mulf %37, %38 : vector<1x8x256xf32>
    %40 = arith.addf %33, %39 : vector<1x8x256xf32>
    %41 = vector.extract_strided_slice %1 {offsets = [0, 5], sizes = [8, 1], strides = [1, 1]} : vector<8x8xf32> to vector<8x1xf32>
    %42 = vector.extract_strided_slice %0 {offsets = [0, 5, 0], sizes = [1, 1, 256], strides = [1, 1, 1]} : vector<1x8x256xf32> to vector<1x1x256xf32>
    %43 = vector.shape_cast %41 : vector<8x1xf32> to vector<1x8x1xf32>
    %44 = vector.broadcast %43 : vector<1x8x1xf32> to vector<1x8x256xf32>
    %45 = vector.broadcast %42 : vector<1x1x256xf32> to vector<1x8x256xf32>
    %46 = arith.mulf %44, %45 : vector<1x8x256xf32>
    %47 = arith.addf %40, %46 : vector<1x8x256xf32>
    %48 = vector.extract_strided_slice %1 {offsets = [0, 6], sizes = [8, 1], strides = [1, 1]} : vector<8x8xf32> to vector<8x1xf32>
    %49 = vector.extract_strided_slice %0 {offsets = [0, 6, 0], sizes = [1, 1, 256], strides = [1, 1, 1]} : vector<1x8x256xf32> to vector<1x1x256xf32>
    %50 = vector.shape_cast %48 : vector<8x1xf32> to vector<1x8x1xf32>
    %51 = vector.broadcast %50 : vector<1x8x1xf32> to vector<1x8x256xf32>
    %52 = vector.broadcast %49 : vector<1x1x256xf32> to vector<1x8x256xf32>
    %53 = arith.mulf %51, %52 : vector<1x8x256xf32>
    %54 = arith.addf %47, %53 : vector<1x8x256xf32>
    %55 = vector.extract_strided_slice %1 {offsets = [0, 7], sizes = [8, 1], strides = [1, 1]} : vector<8x8xf32> to vector<8x1xf32>
    %56 = vector.extract_strided_slice %0 {offsets = [0, 7, 0], sizes = [1, 1, 256], strides = [1, 1, 1]} : vector<1x8x256xf32> to vector<1x1x256xf32>
    %57 = vector.shape_cast %55 : vector<8x1xf32> to vector<1x8x1xf32>
    %58 = vector.broadcast %57 : vector<1x8x1xf32> to vector<1x8x256xf32>
    %59 = vector.broadcast %56 : vector<1x1x256xf32> to vector<1x8x256xf32>
    %60 = arith.mulf %58, %59 : vector<1x8x256xf32>
    %61 = arith.addf %54, %60 : vector<1x8x256xf32>
    %c0_6 = arith.constant 0 : index
    %c0_7 = arith.constant 0 : index
    %c0_8 = arith.constant 0 : index
    %62 = vector.load %arg5[%c0_6, %c0_7, %c0_8] : memref<1x8x256xf32, #tpu.memory_space<vmem>>, vector<1x8x256xf32>
    tpu.vector_store %arg5[%c0_6, %c0_7, %c0_8], %61 {strides = array<i32>} : memref<1x8x256xf32, #tpu.memory_space<vmem>>, vector<1x8x256xf32>,
    return
  }
  func.func @transform_0(%arg0: i32, %arg1: i32) -> (i32, i32, i32) {
    %c0_i32 = arith.constant 0 : i32
    %c0_i32_0 = arith.constant 0 : i32
    return %arg0, %c0_i32, %arg1 : i32, i32, i32
  }
  func.func @transform_1(%arg0: i32, %arg1: i32) -> (i32, i32) {
    %c0_i32 = arith.constant 0 : i32
    %c0_i32_0 = arith.constant 0 : i32
    %c0_i32_1 = arith.constant 0 : i32
    return %c0_i32, %c0_i32_0 : i32, i32
  }
  func.func @transform_2(%arg0: i32, %arg1: i32) -> (i32, i32) {
    %c0_i32 = arith.constant 0 : i32
    %c0_i32_0 = arith.constant 0 : i32
    %c0_i32_1 = arith.constant 0 : i32
    return %c0_i32, %c0_i32_0 : i32, i32
  }
  func.func @transform_3(%arg0: i32, %arg1: i32) -> (i32, i32, i32) {
    %c0_i32 = arith.constant 0 : i32
    %c0_i32_0 = arith.constant 0 : i32
    return %arg0, %c0_i32, %arg1 : i32, i32, i32
  }
}

</mosaic_0001>

<llo_original>
// kernel: tpu_custom_call.1
$region0: #{tpu_custom_call.1}
  #allocation0 [shape = 'u32[]', space=smem, size = 0x4, offset = 0x4, fixed_abs, tag = 'smem constant byte address 0x4 - core index']
  #allocation1 [shape = 'u32[72,128]{1,0:T(1,128)}', space=vmem, size = 0x9000, scoped, tag = 'internal scratch']
  %s0 = inlined_call_operand.hbm [shape: f32[2,8,256], index: 0, kind: input, shape index: {}]
  %s1 = inlined_call_operand.vmem [shape: f32[8,8], index: 1, kind: input, shape index: {}]
  %s2 = inlined_call_operand.vmem [shape: f32[8,1], index: 2, kind: input, shape index: {}]
  %s3 = inlined_call_operand.hbm [shape: f32[2,8,256], index: 3, kind: output, shape index: {}]
  %s4 = sld [smem:[#allocation0]]
  $region49: #{tpu_custom_call.1} parent=0
    _
  %s6 = ssub.s32 1, %s4
  %s7 = scalar_select 0, %s6, %s4
  $region1: #{tpu_custom_call.1} parent=0
    #allocation2 [shape = 'u8[16384]{0}', space=vmem, size = 0x4000, scoped, tag = 'input window, operand 0']
    #allocation3 [shape = 's32[2]{0}', space=sflag, size = 0x8, scoped, tag = 'scoped memory for tpu_custom_call.1']
    #allocation4 [shape = 's32[2]{0}', space=sflag, size = 0x8, scoped, tag = 'scoped memory for tpu_custom_call.1']
    #allocation5 [shape = 'u8[16384]{0}', space=vmem, size = 0x4000, scoped, tag = 'output window, operand 0']
    %8 = vsyncpa [#allocation3], 0
    %s9 = scalar_lea.sflag [#allocation3], 1
    %10 = vsyncpa %s9, 0
    %11 = vsyncpa [#allocation4], 0
    %s12 = scalar_lea.sflag [#allocation4], 1
    %13 = vsyncpa %s12, 0
    loop: start=0, step=1, limit=4
    $region2: #{tpu_custom_call.1} parent=1 // loop_pre_header
      _
    $region3: #{tpu_custom_call.1} parent=1 // loop_header
      %s15 = sphi 0, %s19
      %p16 = scmp.ge.s32.totalorder %s15, 4
      %s22 = sphi 0, %s34
      %s23 = sphi 0, %s30
      %s24 = sphi 0, %s22
      %s25 = sphi 0, %s23
      %s26 = sphi 0, %s24
      %s27 = sphi 0, %s25
      %s39 = sphi 0, %s41
      %s42 = sphi 0, %s39
      %s43 = sphi 0, %s42
      %s59 = sphi 0, %s43
      %s63 = sphi 0, %s63
      %s65 = sphi 0, %s63
      %s66 = sphi 0, %s65
      %s80 = sphi 0, %s66
      %s84 = sphi 0, %s84
      %s86 = sphi 0, %s84
      %s87 = sphi 0, %s86
      %s101 = sphi 0, %s87
      %s109 = sphi 0, %s111
      %s112 = sphi 0, %s109
      %s113 = sphi 0, %s112
      %s129 = sphi 0, %s113
    $region4: #{tpu_custom_call.1} parent=1 // loop_header_branch
      %18 = sbr.rel (%p16) target = $region8
    $region5: #{tpu_custom_call.1} parent=1 // loop_body
      %s20 = ssub.s32 %s15, 1
      %s21 = ssub.s32 %s15, 2
      %s28 = sadd.s32 1, %s23
      %p29 = scmp.ge.s32.totalorder %s28, 1
      %s30 = scalar_select %p29, 0, %s28
      %s31 = sadd.s32 1, %s22
      %s32 = scalar_select %p29, %s31, %s22
      %p33 = scmp.ge.s32.totalorder %s32, 2
      %s34 = scalar_select %p33, 0, %s32
      %s35 = ssub.s32 %s22, %s34
      %s36 = ssub.s32 %s23, %s30
      %s37 = sor.u32 %s35, %s36
      %p38 = scmp.eq.s32.totalorder %s37, 0
      %s40 = sadd.s32 %s39, 1
      %s41 = scalar_select %p38, %s39, %s40
      %p44 = pneg %p38
      %p45 = scmp.eq.s32.totalorder %s15, 1
      %p46 = por %p44, %p45
      %p47 = scmp.ne.s32.totalorder %s39, %s42
      %p48 = scmp.eq.s32.totalorder %s15, 0
      %p49 = por %p47, %p48
      %p50 = scmp.ne.s32.totalorder %s39, %s42
      %p51 = scmp.eq.s32.totalorder %s20, 1
      %p52 = por %p50, %p51
      %p53 = scmp.ne.s32.totalorder %s42, %s43
      %p54 = scmp.eq.s32.totalorder %s20, 0
      %p55 = por %p53, %p54
      %p56 = scmp.ne.s32.totalorder %s42, %s43
      %p57 = scmp.eq.s32.totalorder %s21, 1
      %p58 = por %p56, %p57
      %p60 = scmp.ne.s32.totalorder %s43, %s59
      %p61 = scmp.eq.s32.totalorder %s21, 0
      %p62 = por %p60, %p61
      %s64 = sadd.s32 %s63, 1
      %p67 = scmp.eq.s32.totalorder %s15, 1
      %p68 = scmp.ne.s32.totalorder %s63, %s65
      %p69 = scmp.eq.s32.totalorder %s15, 0
      %p70 = por %p68, %p69
      %p71 = scmp.ne.s32.totalorder %s63, %s65
      %p72 = scmp.eq.s32.totalorder %s20, 1
      %p73 = por %p71, %p72
      %p74 = scmp.ne.s32.totalorder %s65, %s66
      %p75 = scmp.eq.s32.totalorder %s20, 0
      %p76 = por %p74, %p75
      %p77 = scmp.ne.s32.totalorder %s65, %s66
      %p78 = scmp.eq.s32.totalorder %s21, 1
      %p79 = por %p77, %p78
      %p81 = scmp.ne.s32.totalorder %s66, %s80
      %p82 = scmp.eq.s32.totalorder %s21, 0
      %p83 = por %p81, %p82
      %s85 = sadd.s32 %s84, 1
      %p88 = scmp.eq.s32.totalorder %s15, 1
      %p89 = scmp.ne.s32.totalorder %s84, %s86
      %p90 = scmp.eq.s32.totalorder %s15, 0
      %p91 = por %p89, %p90
      %p92 = scmp.ne.s32.totalorder %s84, %s86
      %p93 = scmp.eq.s32.totalorder %s20, 1
      %p94 = por %p92, %p93
      %p95 = scmp.ne.s32.totalorder %s86, %s87
      %p96 = scmp.eq.s32.totalorder %s20, 0
      %p97 = por %p95, %p96
      %p98 = scmp.ne.s32.totalorder %s86, %s87
      %p99 = scmp.eq.s32.totalorder %s21, 1
      %p100 = por %p98, %p99
      %p102 = scmp.ne.s32.totalorder %s87, %s101
      %p103 = scmp.eq.s32.totalorder %s21, 0
      %p104 = por %p102, %p103
      %s105 = ssub.s32 %s22, %s34
      %s106 = ssub.s32 %s23, %s30
      %s107 = sor.u32 %s105, %s106
      %p108 = scmp.eq.s32.totalorder %s107, 0
      %s110 = sadd.s32 %s109, 1
      %s111 = scalar_select %p108, %s109, %s110
      %p114 = pneg %p108
      %p115 = scmp.eq.s32.totalorder %s15, 1
      %p116 = por %p114, %p115
      %p117 = scmp.ne.s32.totalorder %s109, %s112
      %p118 = scmp.eq.s32.totalorder %s15, 0
      %p119 = por %p117, %p118
      %p120 = scmp.ne.s32.totalorder %s109, %s112
      %p121 = scmp.eq.s32.totalorder %s20, 1
      %p122 = por %p120, %p121
      %p123 = scmp.ne.s32.totalorder %s112, %s113
      %p124 = scmp.eq.s32.totalorder %s20, 0
      %p125 = por %p123, %p124
      %p126 = scmp.ne.s32.totalorder %s112, %s113
      %p127 = scmp.eq.s32.totalorder %s21, 1
      %p128 = por %p126, %p127
      %p130 = scmp.ne.s32.totalorder %s113, %s129
      %p131 = scmp.eq.s32.totalorder %s21, 0
      %p132 = por %p130, %p131
      %p133 = scmp.le.s32.totalorder 1, %s15
      %p134 = scmp.lt.s32.totalorder %s15, 3
      %p135 = pnand %p133, %p134
      %p136 = pneg %p135
      // Predicated region
      $region9: #{tpu_custom_call.1} parent=5 // pred_check
        _
      $region10: #{tpu_custom_call.1} parent=5 // pred_check_branch
        %138 = sbr.rel (%p135) target = $region12
      $region11: #{tpu_custom_call.1} parent=5 // pred_region
        %s139 = ssub.s32 %s15, 1
        // Predicated region
        $region13: #{tpu_custom_call.1} parent=11 // pred_check
          %p140 = pneg %p76
        $region14: #{tpu_custom_call.1} parent=11 // pred_check_branch
          %142 = sbr.rel (%p140) target = $region16
        $region15: #{tpu_custom_call.1} parent=11 // pred_region
          _
        $region16: #{tpu_custom_call.1} parent=11 // pred_fallthru
          _
        // Predicated region
        $region17: #{tpu_custom_call.1} parent=11 // pred_check
          %p143 = pneg %p97
        $region18: #{tpu_custom_call.1} parent=11 // pred_check_branch
          %145 = sbr.rel (%p143) target = $region20
        $region19: #{tpu_custom_call.1} parent=11 // pred_region
          _
        $region20: #{tpu_custom_call.1} parent=11 // pred_fallthru
          _
      $region12: #{tpu_custom_call.1} parent=5 // pred_fallthru
        _
      %p146 = scmp.lt.s32.totalorder %s15, 2
      // Predicated region
      $region21: #{tpu_custom_call.1} parent=5 // pred_check
        %p147 = pneg %p146
      $region22: #{tpu_custom_call.1} parent=5 // pred_check_branch
        %149 = sbr.rel (%p147) target = $region24
      $region23: #{tpu_custom_call.1} parent=5 // pred_region
        // Predicated region
        $region25: #{tpu_custom_call.1} parent=23 // pred_check
          %p150 = pneg %p49
        $region26: #{tpu_custom_call.1} parent=23 // pred_check_branch
          %152 = sbr.rel (%p150) target = $region28
        $region27: #{tpu_custom_call.1} parent=23 // pred_region
          %s153 = sand.u32 %s39, 1
          %s154 = scalar_lea.sflag [#allocation3], %s153
          %s155 = sand.u32 %s39, 1
          %s156 = smul.addr %s155, 16
          %s157 = scalar_lea.vmem [#allocation2], %s156
          %s158 = smul.u32 2, %s23
          %160 = vsyncadd %s154, 0
          %s161 = smul.addr %s22, 2
          %s162 = sadd.s32 %s158, %s161
          %s163 = smul.addr %s162, 8
          %s164 = scalar_lea.hbm %s0, %s163
          %s166 = sshll.u32 %s164, 4
          %s167 = int_to_ptr.hbm [resolvable:$true] %s166
          %s168 = sshll.u32 %s157, 4
          %s169 = int_to_ptr.vmem [resolvable:$true] %s168
          %171 = dma.hbm_to_vmem [thread:$0]  %s167, 256, %s169, %s154
        $region28: #{tpu_custom_call.1} parent=23 // pred_fallthru
          _
      $region24: #{tpu_custom_call.1} parent=5 // pred_fallthru
        _
      %p172 = scmp.le.s32.totalorder 1, %s15
      %p173 = scmp.lt.s32.totalorder %s15, 3
      %p174 = pnand %p172, %p173
      %p175 = pneg %p174
      // Predicated region
      $region29: #{tpu_custom_call.1} parent=5 // pred_check
        _
      $region30: #{tpu_custom_call.1} parent=5 // pred_check_branch
        %177 = sbr.rel (%p174) target = $region32
      $region31: #{tpu_custom_call.1} parent=5 // pred_region
        %s178 = ssub.s32 %s15, 1
        %s179 = sand.u32 %s42, 1
        %s180 = scalar_lea.sflag [#allocation3], %s179
        %s181 = sand.u32 %s42, 1
        %s182 = smul.addr %s181, 16
        %s183 = scalar_lea.vmem [#allocation2], %s182
        // Predicated region
        $region33: #{tpu_custom_call.1} parent=31 // pred_check
          %p184 = pneg %p55
        $region34: #{tpu_custom_call.1} parent=31 // pred_check_branch
          %186 = sbr.rel (%p184) target = $region36
        $region35: #{tpu_custom_call.1} parent=31 // pred_region
          %188 = dma.done %s180, 256
        $region36: #{tpu_custom_call.1} parent=31 // pred_fallthru
          _
        %s189 = sand.u32 %s42, 1
        %s190 = scalar_lea.sflag [#allocation3], %s189
        %s191 = sand.u32 %s42, 1
        %s192 = smul.addr %s191, 16
        %s193 = scalar_lea.vmem [#allocation2], %s192
        %p194 = pneg %p55
        %p195 = pneg %p52
        %p196 = pneg %p76
        %p197 = pneg %p73
        %p198 = pneg %p97
        %p199 = pneg %p94
        %p200 = pneg %p125
        %p201 = pneg %p122
        %s202 = sand.u32 %s112, 1
        %s203 = scalar_lea.sflag [#allocation4], %s202
        %s204 = sand.u32 %s112, 1
        %s205 = smul.addr %s204, 16
        %s206 = scalar_lea.vmem [#allocation5], %s205
        %s207 = smul.u32 2, %s25
        %s208 = smul.u32 2, %s25
        %v209 = vld [vmem:[%s183] sm:$0xff]
        %v210 = vld [vmem:[%s183 + $0x8] sm:$0xff]
        %v211 = vld [vmem:[%s1] sm:$0xff]
        %v212 = vld [vmem:[%s2] sm:$0xff]
        %214 = vset.pattern.permute.xlu0 0
        %215 = vperm.xlu0 %214, %v212
        %v216 = vpop.permute.xlu0 %215
        %v218 = vadd.f32 %v209, %v216
        %v219 = vadd.f32 %v210, %v216
        %221 = vset.pattern.permute.xlu0 0
        %222 = vperm.xlu0 %221, %v211
        %v223 = vpop.permute.xlu0 %222
        %v225 = vperm.slane %v209, 0
        %v226 = vperm.slane %v210, 0
        %v227 = vmul.f32 %v223, %v225
        %v228 = vmul.f32 %v223, %v226
        %v229 = vadd.f32 %v218, %v227
        %v230 = vadd.f32 %v219, %v228
        %231 = vset.pattern.permute.xlu0 1
        %232 = vperm.xlu0 %231, %v211
        %v233 = vpop.permute.xlu0 %232
        %v235 = vperm.slane %v209, 1
        %v236 = vperm.slane %v210, 1
        %v237 = vmul.f32 %v233, %v235
        %v238 = vmul.f32 %v233, %v236
        %v239 = vadd.f32 %v229, %v237
        %v240 = vadd.f32 %v230, %v238
        %241 = vset.pattern.permute.xlu0 2
        %242 = vperm.xlu0 %241, %v211
        %v243 = vpop.permute.xlu0 %242
        %v245 = vperm.slane %v209, 2
        %v246 = vperm.slane %v210, 2
        %v247 = vmul.f32 %v243, %v245
        %v248 = vmul.f32 %v243, %v246
        %v249 = vadd.f32 %v239, %v247
        %v250 = vadd.f32 %v240, %v248
        %251 = vset.pattern.permute.xlu0 3
        %252 = vperm.xlu0 %251, %v211
        %v253 = vpop.permute.xlu0 %252
        %v255 = vperm.slane %v209, 3
        %v256 = vperm.slane %v210, 3
        %v257 = vmul.f32 %v253, %v255
        %v258 = vmul.f32 %v253, %v256
        %v259 = vadd.f32 %v249, %v257
        %v260 = vadd.f32 %v250, %v258
        %261 = vset.pattern.permute.xlu0 4
        %262 = vperm.xlu0 %261, %v211
        %v263 = vpop.permute.xlu0 %262
        %v265 = vperm.slane %v209, 4
        %v266 = vperm.slane %v210, 4
        %v267 = vmul.f32 %v263, %v265
        %v268 = vmul.f32 %v263, %v266
        %v269 = vadd.f32 %v259, %v267
        %v270 = vadd.f32 %v260, %v268
        %271 = vset.pattern.permute.xlu0 5
        %272 = vperm.xlu0 %271, %v211
        %v273 = vpop.permute.xlu0 %272
        %v275 = vperm.slane %v209, 5
        %v276 = vperm.slane %v210, 5
        %v277 = vmul.f32 %v273, %v275
        %v278 = vmul.f32 %v273, %v276
        %v279 = vadd.f32 %v269, %v277
        %v280 = vadd.f32 %v270, %v278
        %281 = vset.pattern.permute.xlu0 6
        %282 = vperm.xlu0 %281, %v211
        %v283 = vpop.permute.xlu0 %282
        %v285 = vperm.slane %v209, 6
        %v286 = vperm.slane %v210, 6
        %v287 = vmul.f32 %v283, %v285
        %v288 = vmul.f32 %v283, %v286
        %v289 = vadd.f32 %v279, %v287
        %v290 = vadd.f32 %v280, %v288
        %291 = vset.pattern.permute.xlu0 7
        %292 = vperm.xlu0 %291, %v211
        %v293 = vpop.permute.xlu0 %292
        %v295 = vperm.slane %v209, 7
        %v296 = vperm.slane %v210, 7
        %v297 = vmul.f32 %v293, %v295
        %v298 = vmul.f32 %v293, %v296
        %v299 = vadd.f32 %v289, %v297
        %v300 = vadd.f32 %v290, %v298
        %301 = vst [vmem:[%s206] sm:$0xff] %v299
        %302 = vst [vmem:[%s206 + $0x8] sm:$0xff] %v300
        %s303 = sand.u32 %s112, 1
        %s304 = scalar_lea.sflag [#allocation4], %s303
        %s305 = sand.u32 %s112, 1
        %s306 = smul.addr %s305, 16
        %s307 = scalar_lea.vmem [#allocation5], %s306
        // Predicated region
        $region37: #{tpu_custom_call.1} parent=31 // pred_check
          %p308 = pneg %p122
        $region38: #{tpu_custom_call.1} parent=31 // pred_check_branch
          %310 = sbr.rel (%p308) target = $region40
        $region39: #{tpu_custom_call.1} parent=31 // pred_region
          %s311 = smul.u32 2, %s25
          %313 = vsyncadd %s304, 0
          %s314 = smul.addr %s24, 2
          %s315 = sadd.s32 %s311, %s314
          %s316 = smul.addr %s315, 8
          %s317 = scalar_lea.hbm %s3, %s316
          %s319 = sshll.u32 %s307, 4
          %s320 = int_to_ptr.vmem [resolvable:$true] %s319
          %s321 = sshll.u32 %s317, 4
          %s322 = int_to_ptr.hbm [resolvable:$true] %s321
          %324 = dma.vmem_to_hbm [thread:$0]  %s320, 256, %s322, %s304
        $region40: #{tpu_custom_call.1} parent=31 // pred_fallthru
          _
      $region32: #{tpu_custom_call.1} parent=5 // pred_fallthru
        _
      %p325 = scmp.le.s32.totalorder 2, %s15
      // Predicated region
      $region41: #{tpu_custom_call.1} parent=5 // pred_check
        %p326 = pneg %p325
      $region42: #{tpu_custom_call.1} parent=5 // pred_check_branch
        %328 = sbr.rel (%p326) target = $region44
      $region43: #{tpu_custom_call.1} parent=5 // pred_region
        %s329 = ssub.s32 %s15, 2
        // Predicated region
        $region45: #{tpu_custom_call.1} parent=43 // pred_check
          %p330 = pneg %p128
        $region46: #{tpu_custom_call.1} parent=43 // pred_check_branch
          %332 = sbr.rel (%p330) target = $region48
        $region47: #{tpu_custom_call.1} parent=43 // pred_region
          %s333 = sand.u32 %s113, 1
          %s334 = scalar_lea.sflag [#allocation4], %s333
          %s335 = sand.u32 %s113, 1
          %s336 = smul.addr %s335, 16
          %s337 = scalar_lea.vmem [#allocation5], %s336
          %339 = dma.done %s334, 256
        $region48: #{tpu_custom_call.1} parent=43 // pred_fallthru
          _
      $region44: #{tpu_custom_call.1} parent=5 // pred_fallthru
        _
    $region6: #{tpu_custom_call.1} parent=1 // loop_footer
      %s19 = sadd.s32 1, %s15
    $region7: #{tpu_custom_call.1} parent=1 // loop_footer_branch
      %14 = sbr.rel target = $region3
    $region8: #{tpu_custom_call.1} parent=1 // loop_exit
      _
    %340 = vsyncpa [#allocation3], 1
    %s341 = scalar_lea.sflag [#allocation3], 1
    %342 = vsyncpa %s341, 1
    %343 = vsyncpa [#allocation4], 1
    %s344 = scalar_lea.sflag [#allocation4], 1
    %345 = vsyncpa %s344, 1

</llo_original>
